<compile_context>
chip_gen: v5e
topology: v5e:2x2
jax: 0.10.0
libtpu: 0.0.40
codegen_flags: <defaults>
</compile_context>

<pallas_src>
import functools
import math

import jax
import jax.numpy as jnp
from jax import lax
from jax.experimental import pallas as pl
from jax.experimental.pallas import tpu as pltpu

_INV_SQRT2 = 1.0 / math.sqrt(2.0)
_SQRT_2_OVER_PI = math.sqrt(2.0 / math.pi)


def _round_up(x, m):
    return ((x + m - 1) // m) * m


def _tpu_generation():
    """Best-effort TPU generation from device_kind; None if unknown."""
    try:
        kind = jax.devices()[0].device_kind.lower()
    except Exception:
        return None
    if "tpu" not in kind:
        return None
    for g in (7, 6, 5, 4):
        if str(g) in kind:
            return g
    return None


def _erf(x):
    # Abramowitz & Stegun 7.1.26 (max abs err 1.5e-7). Uses only mul/add/div/
    # exp/abs/where, all of which lower in Mosaic; the exp lands on the EUP.
    p = 0.3275911
    a1, a2, a3, a4, a5 = (0.254829592, -0.284496736, 1.421413741,
                          -1.453152027, 1.061405429)
    ax = jnp.abs(x)
    t = 1.0 / (1.0 + p * ax)
    poly = ((((a5 * t + a4) * t + a3) * t + a2) * t + a1) * t
    y = 1.0 - poly * jnp.exp(-(ax * ax))
    return jnp.where(x < 0.0, -y, y)


def _gelu(h, *, use_tanh):
    if use_tanh:
        # tanh-form GELU: ~half the VALU ops of the erf polynomial plus one
        # EUP tanh; |err| vs the exact erf form ~3e-4 (well inside the bf16
        # matmul tolerance). Used on v6e/v7x per the perf review.
        u = _SQRT_2_OVER_PI * (h + 0.044715 * (h * h * h))
        return 0.5 * h * (1.0 + jnp.tanh(u))
    # Exact (erf) GELU, matching nn.GELU / BertIntermediate default.
    return 0.5 * h * (1.0 + _erf(h * _INV_SQRT2))


# --------------------------------------------------------------------------
# Kernels
# --------------------------------------------------------------------------
def _mlp_kernel(x_ref, w1_ref, b1_ref, w2_ref, b2_ref, g_ref, beta_ref, o_ref,
                *, eps, use_tanh_gelu):
    """Single-pass MLP over one (tm, H) row tile; weights fully VMEM-resident."""
    x_f32 = x_ref[...].astype(jnp.float32)

    # BertIntermediate: Linear(H -> I) + GELU (bf16 MXU feeds, f32 accumulate).
    h = jnp.dot(x_f32.astype(jnp.bfloat16), w1_ref[...],
                preferred_element_type=jnp.float32)
    h = _gelu(h + b1_ref[...], use_tanh=use_tanh_gelu)

    # BertOutput: Linear(I -> H) + dropout(identity at eval) + residual + LN.
    y = jnp.dot(h.astype(jnp.bfloat16), w2_ref[...],
                preferred_element_type=jnp.float32)
    y = y + b2_ref[...] + x_f32

    mean = jnp.mean(y, axis=-1, keepdims=True)
    c = y - mean
    var = jnp.mean(c * c, axis=-1, keepdims=True)
    o_ref[...] = (c * lax.rsqrt(var + eps) * g_ref[...]
                  + beta_ref[...]).astype(o_ref.dtype)


def _mlp_kernel_chunked(x_ref, w1_ref, b1_ref, w2_ref, b2_ref, g_ref, beta_ref,
                        o_ref, acc_ref, *, eps, use_tanh_gelu):
    """Weight-chunked path: grid = (row tiles [parallel], I chunks [arbitrary])."""
    k = pl.program_id(1)

    @pl.when(k == 0)
    def _init():
        acc_ref[...] = jnp.zeros_like(acc_ref)

    h = jnp.dot(x_ref[...].astype(jnp.bfloat16), w1_ref[...],
                preferred_element_type=jnp.float32)
    h = _gelu(h + b1_ref[...], use_tanh=use_tanh_gelu)
    acc_ref[...] += jnp.dot(h.astype(jnp.bfloat16), w2_ref[...],
                            preferred_element_type=jnp.float32)

    @pl.when(k == pl.num_programs(1) - 1)
    def _finalize():
        y = acc_ref[...] + b2_ref[...] + x_ref[...].astype(jnp.float32)
        mean = jnp.mean(y, axis=-1, keepdims=True)
        c = y - mean
        var = jnp.mean(c * c, axis=-1, keepdims=True)
        o_ref[...] = (c * lax.rsqrt(var + eps) * g_ref[...]
                      + beta_ref[...]).astype(o_ref.dtype)


# --------------------------------------------------------------------------
# Tiling / VMEM policy
# --------------------------------------------------------------------------
def _choose_tm(M, tm, gen):
    mxu = 256 if (gen is None or gen >= 6) else 128   # 256x256 MXU on v6e/v7x
    tm = max(1, int(tm))
    if tm >= M:
        tm = M                                        # one full row block
    elif tm >= mxu:
        tm = (tm // mxu) * mxu
    else:
        tm = max(8, (tm // 8) * 8)
    # v7x: 2 TensorCores shard the 'parallel' row axis -> want >= 2 row tiles.
    if gen is not None and gen >= 7 and M > 8 and pl.cdiv(M, tm) < 2:
        tm = _round_up((M + 1) // 2, 8)
    return tm


def _vmem_need(*, resident_bytes, per_step_bytes, tm, H, i_chunk):
    need = resident_bytes                  # single-buffered resident operands
    need += 2 * per_step_bytes             # double-buffered weight chunks
    need += 2 * 2 * tm * H * 4             # double-buffered x in + out tiles
    need += 3 * tm * i_chunk * 4           # GELU / matmul f32 temporaries
    need += tm * H * 4                     # y / accumulator
    return int(need * 1.25) + (4 << 20)    # slack + Mosaic internal scratch


def _vmem_cap(gen):
    # v7x: 64 MiB physical per core -> never request more than 56 MiB.
    # v5e/v6e: 128 MiB physical -> allow up to ~112 MiB.
    if gen is None:
        return 56 << 20                    # conservative planning number
    return (56 << 20) if gen >= 7 else (112 << 20)


# --------------------------------------------------------------------------
# Wrapper
# --------------------------------------------------------------------------
def mlp_layer(hidden_states, params, *, eps=1e-12, tm=512, tk_i=512,
              force_chunked=False):
    """hidden_states: [B, S, H] (f32 or bf16). Returns [B, S, H] (same dtype)."""
    B, S, H = hidden_states.shape
    M = B * S
    x2d = hidden_states.reshape(M, H)
    I = params["w1"].shape[1]

    gen = _tpu_generation()
    use_tanh_gelu = gen is not None and gen >= 6

    # bf16 weights into the MXU (cast once, here); biases / LN params stay f32.
    w1 = params["w1"].astype(jnp.bfloat16)
    w2 = params["w2"].astype(jnp.bfloat16)
    b1, b2 = params["b1"], params["b2"]
    gamma, beta = params["ln_gamma"], params["ln_beta"]

    tm = _choose_tm(M, tm, gen)
    cap = _vmem_cap(gen)

    weight_bytes = 2 * H * I * 2                     # w1 + w2, bf16
    vec_bytes = (I + 3 * H) * 4                      # b1, b2, gamma, beta
    full_need = _vmem_need(resident_bytes=weight_bytes + vec_bytes,
                           per_step_bytes=0, tm=tm, H=H, i_chunk=I)
    chunked = force_chunked or full_need > cap

    itemsize = jnp.dtype(hidden_states.dtype).itemsize
    cost = pl.CostEstimate(
        flops=4 * M * H * I,
        transcendentals=M * I,
        bytes_accessed=2 * M * H * itemsize + weight_bytes + vec_bytes,
    )

    resident = pl.BlockSpec(memory_space=pltpu.MemorySpace.VMEM)
    out_shape = jax.ShapeDtypeStruct((M, H), hidden_states.dtype)

    if not chunked:
        kernel = functools.partial(_mlp_kernel, eps=float(eps),
                                   use_tanh_gelu=use_tanh_gelu)
        vmem_limit = None if gen is None else int(max(16 << 20,
                                                      min(full_need, cap)))
        cp = dict(dimension_semantics=("parallel",))
        if vmem_limit is not None:
            cp["vmem_limit_bytes"] = vmem_limit
        n_tiles = pl.cdiv(M, tm)
        out2d = pl.pallas_call(
            kernel,
            out_shape=out_shape,
            grid=(n_tiles,),
            in_specs=[
                pl.BlockSpec((tm, H), lambda i: (i, 0)),   # x rows (pipelined)
                resident, resident,                        # w1 (H,I), b1 (1,I)
                resident, resident,                        # w2 (I,H), b2 (1,H)
                resident, resident,                        # LN gamma, beta
            ],
            out_specs=pl.BlockSpec((tm, H), lambda i: (i, 0)),
            compiler_params=pltpu.CompilerParams(**cp),
            cost_estimate=cost,
        )(x2d, w1, b1, w2, b2, gamma, beta)
    else:
        # Weight-chunked fallback: loop over the intermediate dim in chunks of
        # tk on an 'arbitrary' grid axis, accumulating y in a VMEM scratch.
        tk = int(tk_i)
        tk = max(128, (tk // 128) * 128) if I >= 128 else I
        tk = min(tk, I)
        n_k = pl.cdiv(I, tk)
        i_pad = n_k * tk
        if i_pad != I:
            # Zero padding along I is exact: GELU(0) == 0 and the padded w2
            # rows only ever multiply those zero columns.
            w1 = jnp.pad(w1, ((0, 0), (0, i_pad - I)))
            b1 = jnp.pad(b1, ((0, 0), (0, i_pad - I)))
            w2 = jnp.pad(w2, ((0, i_pad - I), (0, 0)))

        per_step = 4 * H * tk + 4 * tk               # w1/w2 chunks + b1 chunk
        need = _vmem_need(resident_bytes=3 * H * 4, per_step_bytes=per_step,
                          tm=tm, H=H, i_chunk=tk)
        # If even the chunked working set exceeds the cap, shrink the row tile.
        while need > cap and tm > 64:
            tm = max(64, (tm // 16) * 8)
            need = _vmem_need(resident_bytes=3 * H * 4, per_step_bytes=per_step,
                              tm=tm, H=H, i_chunk=tk)
        vmem_limit = None if gen is None else int(max(16 << 20, min(need, cap)))

        kernel = functools.partial(_mlp_kernel_chunked, eps=float(eps),
                                   use_tanh_gelu=use_tanh_gelu)
        cp = dict(dimension_semantics=("parallel", "arbitrary"))
        if vmem_limit is not None:
            cp["vmem_limit_bytes"] = vmem_limit
        n_tiles = pl.cdiv(M, tm)
        out2d = pl.pallas_call(
            kernel,
            out_shape=out_shape,
            grid=(n_tiles, n_k),
            in_specs=[
                pl.BlockSpec((tm, H), lambda i, k: (i, 0)),   # x rows
                pl.BlockSpec((H, tk), lambda i, k: (0, k)),   # w1 chunk
                pl.BlockSpec((1, tk), lambda i, k: (0, k)),   # b1 chunk
                pl.BlockSpec((tk, H), lambda i, k: (k, 0)),   # w2 chunk
                resident, resident, resident,                 # b2, gamma, beta
            ],
            out_specs=pl.BlockSpec((tm, H), lambda i, k: (i, 0)),
            scratch_shapes=[pltpu.VMEM((tm, H), jnp.float32)],
            compiler_params=pltpu.CompilerParams(**cp),
            cost_estimate=cost,
        )(x2d, w1, b1, w2, b2, gamma, beta)

    return out2d.reshape(B, S, H)


# --------------------------------------------------------------------------
# Params / reference
# --------------------------------------------------------------------------
def init_params(key, hidden_size, intermediate_size):
    k1, k2, k3, k4 = jax.random.split(key, 4)
    scale1 = 1.0 / jnp.sqrt(hidden_size)
    scale2 = 1.0 / jnp.sqrt(intermediate_size)
    return {
        # stored as (in, out); equivalent to PyTorch Linear weight.T
        "w1": jax.random.normal(k1, (hidden_size, intermediate_size),
                                jnp.float32) * scale1,
        "b1": jax.random.normal(k2, (1, intermediate_size), jnp.float32) * 0.02,
        "w2": jax.random.normal(k3, (intermediate_size, hidden_size),
                                jnp.float32) * scale2,
        "b2": jax.random.normal(k4, (1, hidden_size), jnp.float32) * 0.02,
        # LayerNorm default init: weight=1, bias=0
        "ln_gamma": jnp.ones((1, hidden_size), jnp.float32),
        "ln_beta": jnp.zeros((1, hidden_size), jnp.float32),
    }


def _reference(x, p, *, eps=1e-12, use_tanh_gelu=False):
    # Pure-JAX reference mirroring the kernel's precision policy (bf16 matmul
    # operands, f32 accumulation / elementwise, same GELU flavor).
    B, S, H = x.shape
    x2 = x.reshape(-1, H).astype(jnp.float32)
    w1 = p["w1"].astype(jnp.bfloat16)
    w2 = p["w2"].astype(jnp.bfloat16)
    h = jnp.dot(x2.astype(jnp.bfloat16), w1,
                preferred_element_type=jnp.float32) + p["b1"]
    h = _gelu(h, use_tanh=use_tanh_gelu)
    y = jnp.dot(h.astype(jnp.bfloat16), w2,
                preferred_element_type=jnp.float32) + p["b2"] + x2
    mean = y.mean(-1, keepdims=True)
    var = ((y - mean) ** 2).mean(-1, keepdims=True)
    out = (y - mean) * lax.rsqrt(var + eps) * p["ln_gamma"] + p["ln_beta"]
    return out.reshape(B, S, H).astype(x.dtype)


if __name__ == "__main__":
    # Small, lane-aligned demo shapes (BERT-style I = 4*H).
    B, S, H, I = 2, 8, 128, 512
    key = jax.random.PRNGKey(0)
    kx, kp = jax.random.split(key)

    hidden_states = jax.random.normal(kx, (B, S, H), jnp.float32)
    params = init_params(kp, H, I)

    gen = _tpu_generation()
    use_tanh = gen is not None and gen >= 6
    ref = _reference(hidden_states, params, use_tanh_gelu=use_tanh)

    # Main (weights fully resident in VMEM) path.
    out = jax.block_until_ready(mlp_layer(hidden_states, params))
    assert out.shape == (B, S, H)
    # bf16 MXU operands => looser tolerance than a pure-f32 comparison.
    assert jnp.allclose(out, ref, atol=2e-2, rtol=2e-2), (
        float(jnp.max(jnp.abs(out - ref))))

    # I-chunked accumulator fallback (used when w1+w2 exceed the VMEM budget).
    out_c = jax.block_until_ready(
        mlp_layer(hidden_states, params, force_chunked=True, tk_i=256))
    assert jnp.allclose(out_c, ref, atol=2e-2, rtol=2e-2), (
        float(jnp.max(jnp.abs(out_c - ref))))

    # TODO(synk): nn.Dropout is implemented as identity (inference mode); a
    # training-mode stochastic mask would use pltpu.prng_seed/prng_random_bits.
    print("KERNEL_OK")
</pallas_src>

<mosaic_0001>
module attributes {stable_mosaic.version = 11 : i64} {
  func.func @_mlp_kernel(%arg0: i32, %arg1: memref<16x128xf32, #tpu.memory_space<vmem>>, %arg2: memref<128x512xbf16, #tpu.memory_space<vmem>>, %arg3: memref<1x512xf32, #tpu.memory_space<vmem>>, %arg4: memref<512x128xbf16, #tpu.memory_space<vmem>>, %arg5: memref<1x128xf32, #tpu.memory_space<vmem>>, %arg6: memref<1x128xf32, #tpu.memory_space<vmem>>, %arg7: memref<1x128xf32, #tpu.memory_space<vmem>>, %arg8: memref<16x128xf32, #tpu.memory_space<vmem>>) attributes {dimension_semantics = [#tpu.dimension_semantics<parallel>], iteration_bounds = array<i64: 1>, scalar_prefetch = 0 : i64, scratch_operands = 0 : i64, tpu.core_type = #tpu.core_type<tc>, window_params = [{transform_indices = @transform_0, window_bounds = array<i64: 16, 128>}, {pipeline_mode = #tpu.pipeline_mode<synchronous>, transform_indices = @transform_1, window_bounds = array<i64: 128, 512>}, {pipeline_mode = #tpu.pipeline_mode<synchronous>, transform_indices = @transform_2, window_bounds = array<i64: 1, 512>}, {pipeline_mode = #tpu.pipeline_mode<synchronous>, transform_indices = @transform_3, window_bounds = array<i64: 512, 128>}, {pipeline_mode = #tpu.pipeline_mode<synchronous>, transform_indices = @transform_4, window_bounds = array<i64: 1, 128>}, {pipeline_mode = #tpu.pipeline_mode<synchronous>, transform_indices = @transform_5, window_bounds = array<i64: 1, 128>}, {pipeline_mode = #tpu.pipeline_mode<synchronous>, transform_indices = @transform_6, window_bounds = array<i64: 1, 128>}, {transform_indices = @transform_7, window_bounds = array<i64: 16, 128>}]} {
    %c0 = arith.constant 0 : index
    %c0_0 = arith.constant 0 : index
    %0 = vector.load %arg1[%c0, %c0_0] : memref<16x128xf32, #tpu.memory_space<vmem>>, vector<16x128xf32>
    %1 = arith.truncf %0 : vector<16x128xf32> to vector<16x128xbf16>
    %c0_1 = arith.constant 0 : index
    %c0_2 = arith.constant 0 : index
    %2 = vector.load %arg2[%c0_1, %c0_2] : memref<128x512xbf16, #tpu.memory_space<vmem>>, vector<128x512xbf16>
    %cst = arith.constant dense<0.000000e+00> : vector<16x512xf32>
    %3 = tpu.matmul %1, %2, %cst {dimension_numbers = #tpu.dot_dimension_numbers<[1], [0], [0], [1], [0, 0, 1, 1], [], []>} : vector<16x128xbf16>, vector<128x512xbf16>, vector<16x512xf32> -> vector<16x512xf32>
    %c0_3 = arith.constant 0 : index
    %c0_4 = arith.constant 0 : index
    %4 = vector.load %arg3[%c0_3, %c0_4] : memref<1x512xf32, #tpu.memory_space<vmem>>, vector<1x512xf32>
    %5 = vector.broadcast %4 : vector<1x512xf32> to vector<16x512xf32>
    %6 = arith.addf %3, %5 : vector<16x512xf32>
    %cst_5 = arith.constant 5.000000e-01 : f32
    %7 = vector.broadcast %cst_5 : f32 to vector<16x512xf32>
    %8 = arith.mulf %7, %6 : vector<16x512xf32>
    %cst_6 = arith.constant 0.707106769 : f32
    %9 = vector.broadcast %cst_6 : f32 to vector<16x512xf32>
    %10 = arith.mulf %6, %9 : vector<16x512xf32>
    %11 = math.absf %10 : vector<16x512xf32>
    %cst_7 = arith.constant 0.327591091 : f32
    %12 = vector.broadcast %cst_7 : f32 to vector<16x512xf32>
    %13 = arith.mulf %12, %11 : vector<16x512xf32>
    %cst_8 = arith.constant 1.000000e+00 : f32
    %14 = vector.broadcast %cst_8 : f32 to vector<16x512xf32>
    %15 = arith.addf %14, %13 : vector<16x512xf32>
    %cst_9 = arith.constant 1.000000e+00 : f32
    %16 = vector.broadcast %cst_9 : f32 to vector<16x512xf32>
    %17 = arith.divf %16, %15 : vector<16x512xf32>
    %cst_10 = arith.constant 1.06140542 : f32
    %18 = vector.broadcast %cst_10 : f32 to vector<16x512xf32>
    %19 = arith.mulf %18, %17 : vector<16x512xf32>
    %cst_11 = arith.constant -1.45315206 : f32
    %20 = vector.broadcast %cst_11 : f32 to vector<16x512xf32>
    %21 = arith.addf %19, %20 : vector<16x512xf32>
    %22 = arith.mulf %21, %17 : vector<16x512xf32>
    %cst_12 = arith.constant 1.42141378 : f32
    %23 = vector.broadcast %cst_12 : f32 to vector<16x512xf32>
    %24 = arith.addf %22, %23 : vector<16x512xf32>
    %25 = arith.mulf %24, %17 : vector<16x512xf32>
    %cst_13 = arith.constant -0.284496725 : f32
    %26 = vector.broadcast %cst_13 : f32 to vector<16x512xf32>
    %27 = arith.addf %25, %26 : vector<16x512xf32>
    %28 = arith.mulf %27, %17 : vector<16x512xf32>
    %cst_14 = arith.constant 0.254829586 : f32
    %29 = vector.broadcast %cst_14 : f32 to vector<16x512xf32>
    %30 = arith.addf %28, %29 : vector<16x512xf32>
    %31 = arith.mulf %30, %17 : vector<16x512xf32>
    %32 = arith.mulf %11, %11 : vector<16x512xf32>
    %cst_15 = arith.constant 0.000000e+00 : f32
    %33 = vector.broadcast %cst_15 : f32 to vector<16x512xf32>
    %34 = arith.subf %33, %32 : vector<16x512xf32>
    %35 = math.exp %34 : vector<16x512xf32>
    %36 = arith.mulf %31, %35 : vector<16x512xf32>
    %cst_16 = arith.constant 1.000000e+00 : f32
    %37 = vector.broadcast %cst_16 : f32 to vector<16x512xf32>
    %38 = arith.subf %37, %36 : vector<16x512xf32>
    %cst_17 = arith.constant 0.000000e+00 : f32
    %39 = vector.broadcast %cst_17 : f32 to vector<16x512xf32>
    %40 = arith.cmpf olt, %10, %39 : vector<16x512xf32>
    %cst_18 = arith.constant 0.000000e+00 : f32
    %41 = vector.broadcast %cst_18 : f32 to vector<16x512xf32>
    %42 = arith.subf %41, %38 : vector<16x512xf32>
    %43 = arith.select %40, %42, %38 : vector<16x512xi1>, vector<16x512xf32>
    %cst_19 = arith.constant 1.000000e+00 : f32
    %44 = vector.broadcast %cst_19 : f32 to vector<16x512xf32>
    %45 = arith.addf %44, %43 : vector<16x512xf32>
    %46 = arith.mulf %8, %45 : vector<16x512xf32>
    %47 = arith.truncf %46 : vector<16x512xf32> to vector<16x512xbf16>
    %c0_20 = arith.constant 0 : index
    %c0_21 = arith.constant 0 : index
    %48 = vector.load %arg4[%c0_20, %c0_21] : memref<512x128xbf16, #tpu.memory_space<vmem>>, vector<512x128xbf16>
    %cst_22 = arith.constant dense<0.000000e+00> : vector<16x128xf32>
    %49 = tpu.matmul %47, %48, %cst_22 {dimension_numbers = #tpu.dot_dimension_numbers<[1], [0], [0], [1], [0, 0, 1, 1], [], []>} : vector<16x512xbf16>, vector<512x128xbf16>, vector<16x128xf32> -> vector<16x128xf32>
    %c0_23 = arith.constant 0 : index
    %c0_24 = arith.constant 0 : index
    %50 = vector.load %arg5[%c0_23, %c0_24] : memref<1x128xf32, #tpu.memory_space<vmem>>, vector<1x128xf32>
    %51 = vector.broadcast %50 : vector<1x128xf32> to vector<16x128xf32>
    %52 = arith.addf %49, %51 : vector<16x128xf32>
    %53 = arith.addf %52, %0 : vector<16x128xf32>
    %cst_25 = arith.constant dense<0.000000e+00> : vector<16xf32>
    %54 = vector.multi_reduction <add>, %53, %cst_25 [1] : vector<16x128xf32> to vector<16xf32>
    %55 = vector.shape_cast %54 : vector<16xf32> to vector<16x1xf32>
    %cst_26 = arith.constant 1.280000e+02 : f32
    %56 = vector.broadcast %cst_26 : f32 to vector<16x1xf32>
    %57 = arith.divf %55, %56 : vector<16x1xf32>
    %58 = vector.broadcast %57 : vector<16x1xf32> to vector<16x128xf32>
    %59 = arith.subf %53, %58 : vector<16x128xf32>
    %60 = arith.mulf %59, %59 : vector<16x128xf32>
    %cst_27 = arith.constant dense<0.000000e+00> : vector<16xf32>
    %61 = vector.multi_reduction <add>, %60, %cst_27 [1] : vector<16x128xf32> to vector<16xf32>
    %62 = vector.shape_cast %61 : vector<16xf32> to vector<16x1xf32>
    %cst_28 = arith.constant 1.280000e+02 : f32
    %63 = vector.broadcast %cst_28 : f32 to vector<16x1xf32>
    %64 = arith.divf %62, %63 : vector<16x1xf32>
    %cst_29 = arith.constant 9.99999996E-13 : f32
    %65 = vector.broadcast %cst_29 : f32 to vector<16x1xf32>
    %66 = arith.addf %64, %65 : vector<16x1xf32>
    %67 = math.rsqrt %66 : vector<16x1xf32>
    %68 = vector.broadcast %67 : vector<16x1xf32> to vector<16x128xf32>
    %69 = arith.mulf %59, %68 : vector<16x128xf32>
    %c0_30 = arith.constant 0 : index
    %c0_31 = arith.constant 0 : index
    %70 = vector.load %arg6[%c0_30, %c0_31] : memref<1x128xf32, #tpu.memory_space<vmem>>, vector<1x128xf32>
    %71 = vector.broadcast %70 : vector<1x128xf32> to vector<16x128xf32>
    %72 = arith.mulf %69, %71 : vector<16x128xf32>
    %c0_32 = arith.constant 0 : index
    %c0_33 = arith.constant 0 : index
    %73 = vector.load %arg7[%c0_32, %c0_33] : memref<1x128xf32, #tpu.memory_space<vmem>>, vector<1x128xf32>
    %74 = vector.broadcast %73 : vector<1x128xf32> to vector<16x128xf32>
    %75 = arith.addf %72, %74 : vector<16x128xf32>
    %c0_34 = arith.constant 0 : index
    %c0_35 = arith.constant 0 : index
    %76 = vector.load %arg8[%c0_34, %c0_35] : memref<16x128xf32, #tpu.memory_space<vmem>>, vector<16x128xf32>
    tpu.vector_store %arg8[%c0_34, %c0_35], %75 {strides = array<i32>} : memref<16x128xf32, #tpu.memory_space<vmem>>, vector<16x128xf32>,
    return
  }
  func.func @transform_0(%arg0: i32) -> (i32, i32) {
    %c0_i32 = arith.constant 0 : i32
    %c0_i32_0 = arith.constant 0 : i32
    return %arg0, %c0_i32 : i32, i32
  }
  func.func @transform_1(%arg0: i32) -> (i32, i32) {
    %c0_i32 = arith.constant 0 : i32
    %c0_i32_0 = arith.constant 0 : i32
    %c0_i32_1 = arith.constant 0 : i32
    return %c0_i32, %c0_i32_0 : i32, i32
  }
  func.func @transform_2(%arg0: i32) -> (i32, i32) {
    %c0_i32 = arith.constant 0 : i32
    %c0_i32_0 = arith.constant 0 : i32
    %c0_i32_1 = arith.constant 0 : i32
    return %c0_i32, %c0_i32_0 : i32, i32
  }
  func.func @transform_3(%arg0: i32) -> (i32, i32) {
    %c0_i32 = arith.constant 0 : i32
    %c0_i32_0 = arith.constant 0 : i32
    %c0_i32_1 = arith.constant 0 : i32
    return %c0_i32, %c0_i32_0 : i32, i32
  }
  func.func @transform_4(%arg0: i32) -> (i32, i32) {
    %c0_i32 = arith.constant 0 : i32
    %c0_i32_0 = arith.constant 0 : i32
    %c0_i32_1 = arith.constant 0 : i32
    return %c0_i32, %c0_i32_0 : i32, i32
  }
  func.func @transform_5(%arg0: i32) -> (i32, i32) {
    %c0_i32 = arith.constant 0 : i32
    %c0_i32_0 = arith.constant 0 : i32
    %c0_i32_1 = arith.constant 0 : i32
    return %c0_i32, %c0_i32_0 : i32, i32
  }
  func.func @transform_6(%arg0: i32) -> (i32, i32) {
    %c0_i32 = arith.constant 0 : i32
    %c0_i32_0 = arith.constant 0 : i32
    %c0_i32_1 = arith.constant 0 : i32
    return %c0_i32, %c0_i32_0 : i32, i32
  }
  func.func @transform_7(%arg0: i32) -> (i32, i32) {
    %c0_i32 = arith.constant 0 : i32
    %c0_i32_0 = arith.constant 0 : i32
    return %arg0, %c0_i32 : i32, i32
  }
}

</mosaic_0001>

<llo_original>
// kernel: tpu_custom_call.1
$region0: #{tpu_custom_call.1}
  #allocation0 [shape = 'u32[]', space=smem, size = 0x4, offset = 0x4, fixed_abs, tag = 'smem constant byte address 0x4 - core index']
  #allocation1 [shape = 'u32[72,128]{1,0:T(1,128)}', space=vmem, size = 0x9000, scoped, tag = 'internal scratch']
  %s0 = inlined_call_operand.hbm [shape: f32[16,128], index: 0, kind: input, shape index: {}]
  %s1 = inlined_call_operand.hbm [shape: bf16[128,512], index: 1, kind: input, shape index: {}]
  %s2 = inlined_call_operand.hbm [shape: f32[1,512], index: 2, kind: input, shape index: {}]
  %s3 = inlined_call_operand.hbm [shape: bf16[512,128], index: 3, kind: input, shape index: {}]
  %s4 = inlined_call_operand.vmem [shape: f32[1,128], index: 4, kind: input, shape index: {}]
  %s5 = inlined_call_operand.vmem [shape: f32[1,128], index: 5, kind: input, shape index: {}]
  %s6 = inlined_call_operand.vmem [shape: f32[1,128], index: 6, kind: input, shape index: {}]
  %s7 = inlined_call_operand.hbm [shape: f32[16,128], index: 7, kind: output, shape index: {}]
  %s8 = sld [smem:[#allocation0]]
  $region54: #{tpu_custom_call.1} parent=0
    _
  %s10 = ssub.s32 1, %s8
  %s11 = scalar_select 0, %s10, %s8
  $region1: #{tpu_custom_call.1} parent=0
    #allocation2 [shape = 'u8[8192]{0}', space=vmem, size = 0x2000, scoped, tag = 'input window, operand 0, single buffered']
    #allocation3 [shape = 's32[1]{0}', space=sflag, size = 0x4, scoped, tag = 'scoped memory for tpu_custom_call.1']
    #allocation4 [shape = 's32[1]{0}', space=sflag, size = 0x4, scoped, tag = 'scoped memory for tpu_custom_call.1']
    #allocation5 [shape = 'u8[131072]{0}', space=vmem, size = 0x20000, scoped, tag = 'input window, operand 1, single buffered']
    #allocation6 [shape = 's32[1]{0}', space=sflag, size = 0x4, scoped, tag = 'scoped memory for tpu_custom_call.1']
    #allocation7 [shape = 'u8[2048]{0}', space=vmem, size = 0x800, scoped, tag = 'input window, operand 2, single buffered']
    #allocation8 [shape = 'u8[131072]{0}', space=vmem, size = 0x20000, scoped, tag = 'input window, operand 3, single buffered']
    #allocation9 [shape = 's32[1]{0}', space=sflag, size = 0x4, scoped, tag = 'scoped memory for tpu_custom_call.1']
    #allocation10 [shape = 'u8[8192]{0}', space=vmem, size = 0x2000, scoped, tag = 'output window, operand 0, single buffered']
    %12 = vsyncpa [#allocation3], 0
    %13 = vsyncpa [#allocation6], 0
    %14 = vsyncpa [#allocation9], 0
    %15 = vsyncpa [#allocation4], 0
    // Predicated region
    $region2: #{tpu_custom_call.1} parent=1 // pred_check
      _
    $region3: #{tpu_custom_call.1} parent=1 // pred_check_branch
      %17 = sbr.rel (0) target = $region5
    $region4: #{tpu_custom_call.1} parent=1 // pred_region
      %19 = vsyncadd [#allocation3], 0
      %s20 = sshll.u32 %s0, 4
      %s21 = int_to_ptr.hbm [resolvable:$true] %s20
      %s22 = sshll.u32 [#allocation2], 4
      %s23 = int_to_ptr.vmem [resolvable:$true] %s22
      %28 = dma.hbm_to_vmem [thread:$0]  %s21, 256, %s23, [#allocation3], 128, 128, 8
    $region5: #{tpu_custom_call.1} parent=1 // pred_fallthru
      _
    // Predicated region
    $region6: #{tpu_custom_call.1} parent=1 // pred_check
      _
    $region7: #{tpu_custom_call.1} parent=1 // pred_check_branch
      %30 = sbr.rel (0) target = $region9
    $region8: #{tpu_custom_call.1} parent=1 // pred_region
      %32 = vsyncadd [#allocation6], 0
      %s33 = sshll.u32 %s1, 4
      %s34 = int_to_ptr.hbm [resolvable:$true] %s33
      %s35 = sshll.u32 [#allocation5], 4
      %s36 = int_to_ptr.vmem [resolvable:$true] %s35
      %41 = dma.hbm_to_vmem [thread:$0]  %s34, 4096, %s36, [#allocation6], 256, 256, 16
    $region9: #{tpu_custom_call.1} parent=1 // pred_fallthru
      _
    // Predicated region
    $region10: #{tpu_custom_call.1} parent=1 // pred_check
      _
    $region11: #{tpu_custom_call.1} parent=1 // pred_check_branch
      %43 = sbr.rel (0) target = $region13
    $region12: #{tpu_custom_call.1} parent=1 // pred_region
      %45 = vsyncadd [#allocation6], 0
      %s47 = sshll.u32 %s2, 4
      %s48 = int_to_ptr.hbm [resolvable:$true] %s47
      %s49 = sshll.u32 [#allocation7], 4
      %s50 = int_to_ptr.vmem [resolvable:$true] %s49
      %52 = dma.hbm_to_vmem [thread:$0]  %s48, 64, %s50, [#allocation6]
    $region13: #{tpu_custom_call.1} parent=1 // pred_fallthru
      _
    // Predicated region
    $region14: #{tpu_custom_call.1} parent=1 // pred_check
      _
    $region15: #{tpu_custom_call.1} parent=1 // pred_check_branch
      %54 = sbr.rel (0) target = $region17
    $region16: #{tpu_custom_call.1} parent=1 // pred_region
      %56 = vsyncadd [#allocation9], 0
      %s57 = sshll.u32 %s3, 4
      %s58 = int_to_ptr.hbm [resolvable:$true] %s57
      %s59 = sshll.u32 [#allocation8], 4
      %s60 = int_to_ptr.vmem [resolvable:$true] %s59
      %65 = dma.hbm_to_vmem [thread:$0]  %s58, 4096, %s60, [#allocation9], 64, 64, 4
    $region17: #{tpu_custom_call.1} parent=1 // pred_fallthru
      _
    // Predicated region
    $region18: #{tpu_custom_call.1} parent=1 // pred_check
      _
    $region19: #{tpu_custom_call.1} parent=1 // pred_check_branch
      %67 = sbr.rel (0) target = $region21
    $region20: #{tpu_custom_call.1} parent=1 // pred_region
      _
    $region21: #{tpu_custom_call.1} parent=1 // pred_fallthru
      _
    // Predicated region
    $region22: #{tpu_custom_call.1} parent=1 // pred_check
      _
    $region23: #{tpu_custom_call.1} parent=1 // pred_check_branch
      %69 = sbr.rel (0) target = $region25
    $region24: #{tpu_custom_call.1} parent=1 // pred_region
      _
    $region25: #{tpu_custom_call.1} parent=1 // pred_fallthru
      _
    // Predicated region
    $region26: #{tpu_custom_call.1} parent=1 // pred_check
      _
    $region27: #{tpu_custom_call.1} parent=1 // pred_check_branch
      %71 = sbr.rel (0) target = $region29
    $region28: #{tpu_custom_call.1} parent=1 // pred_region
      _
    $region29: #{tpu_custom_call.1} parent=1 // pred_fallthru
      _
    // Predicated region
    $region30: #{tpu_custom_call.1} parent=1 // pred_check
      _
    $region31: #{tpu_custom_call.1} parent=1 // pred_check_branch
      %73 = sbr.rel (0) target = $region33
    $region32: #{tpu_custom_call.1} parent=1 // pred_region
      %75 = dma.done [#allocation3], 256
    $region33: #{tpu_custom_call.1} parent=1 // pred_fallthru
      _
    // Predicated region
    $region34: #{tpu_custom_call.1} parent=1 // pred_check
      _
    $region35: #{tpu_custom_call.1} parent=1 // pred_check_branch
      %77 = sbr.rel (0) target = $region37
    $region36: #{tpu_custom_call.1} parent=1 // pred_region
      %79 = dma.done [#allocation6], 4096
    $region37: #{tpu_custom_call.1} parent=1 // pred_fallthru
      _
    // Predicated region
    $region38: #{tpu_custom_call.1} parent=1 // pred_check
      _
    $region39: #{tpu_custom_call.1} parent=1 // pred_check_branch
      %81 = sbr.rel (0) target = $region41
    $region40: #{tpu_custom_call.1} parent=1 // pred_region
      %83 = dma.done [#allocation6], 64
    $region41: #{tpu_custom_call.1} parent=1 // pred_fallthru
      _
    // Predicated region
    $region42: #{tpu_custom_call.1} parent=1 // pred_check
      _
    $region43: #{tpu_custom_call.1} parent=1 // pred_check_branch
      %85 = sbr.rel (0) target = $region45
    $region44: #{tpu_custom_call.1} parent=1 // pred_region
      %87 = dma.done [#allocation9], 4096
    $region45: #{tpu_custom_call.1} parent=1 // pred_fallthru
      _
    %v88 = vld [vmem:[#allocation2] sm:$0xff]
    %v89 = vld [vmem:[#allocation2 + $0x8] sm:$0xff]
    %v90 = vpack.c.bf16 %v89, %v88
    %v91 = vld [vmem:[#allocation5] sm:$0xff]
    %v92 = vld [vmem:[#allocation5 + $0x8] sm:$0xff]
    %v93 = vld [vmem:[#allocation5 + $0x10] sm:$0xff]
    %v94 = vld [vmem:[#allocation5 + $0x18] sm:$0xff]
    %v95 = vld [vmem:[#allocation5 + $0x20] sm:$0xff]
    %v96 = vld [vmem:[#allocation5 + $0x28] sm:$0xff]
    %v97 = vld [vmem:[#allocation5 + $0x30] sm:$0xff]
    %v98 = vld [vmem:[#allocation5 + $0x38] sm:$0xff]
    %v99 = vld [vmem:[#allocation5 + $0x40] sm:$0xff]
    %v100 = vld [vmem:[#allocation5 + $0x48] sm:$0xff]
    %v101 = vld [vmem:[#allocation5 + $0x50] sm:$0xff]
    %v102 = vld [vmem:[#allocation5 + $0x58] sm:$0xff]
    %v103 = vld [vmem:[#allocation5 + $0x60] sm:$0xff]
    %v104 = vld [vmem:[#allocation5 + $0x68] sm:$0xff]
    %v105 = vld [vmem:[#allocation5 + $0x70] sm:$0xff]
    %v106 = vld [vmem:[#allocation5 + $0x78] sm:$0xff]
    %v107 = vld [vmem:[#allocation5 + $0x80] sm:$0xff]
    %v108 = vld [vmem:[#allocation5 + $0x88] sm:$0xff]
    %v109 = vld [vmem:[#allocation5 + $0x90] sm:$0xff]
    %v110 = vld [vmem:[#allocation5 + $0x98] sm:$0xff]
    %v111 = vld [vmem:[#allocation5 + $0xa0] sm:$0xff]
    %v112 = vld [vmem:[#allocation5 + $0xa8] sm:$0xff]
    %v113 = vld [vmem:[#allocation5 + $0xb0] sm:$0xff]
    %v114 = vld [vmem:[#allocation5 + $0xb8] sm:$0xff]
    %v115 = vld [vmem:[#allocation5 + $0xc0] sm:$0xff]
    %v116 = vld [vmem:[#allocation5 + $0xc8] sm:$0xff]
    %v117 = vld [vmem:[#allocation5 + $0xd0] sm:$0xff]
    %v118 = vld [vmem:[#allocation5 + $0xd8] sm:$0xff]
    %v119 = vld [vmem:[#allocation5 + $0xe0] sm:$0xff]
    %v120 = vld [vmem:[#allocation5 + $0xe8] sm:$0xff]
    %v121 = vld [vmem:[#allocation5 + $0xf0] sm:$0xff]
    %v122 = vld [vmem:[#allocation5 + $0xf8] sm:$0xff]
    %v123 = vld [vmem:[#allocation7] sm:$0xf]
    %v125 = vperm.slane %v123, 0
    %v126 = vperm.slane %v123, 1
    %v127 = vperm.slane %v123, 2
    %v128 = vperm.slane %v123, 3
    %v165 = vunpack.c.l.b16 %v91
    %v166 = vunpack.c.h.b16 %v91
    %v167 = vunpack.c.l.b16 %v92
    %v168 = vunpack.c.h.b16 %v92
    %v169 = vunpack.c.l.b16 %v93
    %v170 = vunpack.c.h.b16 %v93
    %v171 = vunpack.c.l.b16 %v94
    %v172 = vunpack.c.h.b16 %v94
    %v173 = vunpack.c.l.b16 %v95
    %v174 = vunpack.c.h.b16 %v95
    %v175 = vunpack.c.l.b16 %v96
    %v176 = vunpack.c.h.b16 %v96
    %v177 = vunpack.c.l.b16 %v97
    %v178 = vunpack.c.h.b16 %v97
    %v179 = vunpack.c.l.b16 %v98
    %v180 = vunpack.c.h.b16 %v98
    %v181 = vunpack.c.l.b16 %v99
    %v182 = vunpack.c.h.b16 %v99
    %v183 = vunpack.c.l.b16 %v100
    %v184 = vunpack.c.h.b16 %v100
    %v185 = vunpack.c.l.b16 %v101
    %v186 = vunpack.c.h.b16 %v101
    %v187 = vunpack.c.l.b16 %v102
    %v188 = vunpack.c.h.b16 %v102
    %v189 = vunpack.c.l.b16 %v103
    %v190 = vunpack.c.h.b16 %v103
    %v191 = vunpack.c.l.b16 %v104
    %v192 = vunpack.c.h.b16 %v104
    %v193 = vunpack.c.l.b16 %v105
    %v194 = vunpack.c.h.b16 %v105
    %v195 = vunpack.c.l.b16 %v106
    %v196 = vunpack.c.h.b16 %v106
    %v197 = vunpack.c.l.b16 %v107
    %v198 = vunpack.c.h.b16 %v107
    %v199 = vunpack.c.l.b16 %v108
    %v200 = vunpack.c.h.b16 %v108
    %v201 = vunpack.c.l.b16 %v109
    %v202 = vunpack.c.h.b16 %v109
    %v203 = vunpack.c.l.b16 %v110
    %v204 = vunpack.c.h.b16 %v110
    %v205 = vunpack.c.l.b16 %v111
    %v206 = vunpack.c.h.b16 %v111
    %v207 = vunpack.c.l.b16 %v112
    %v208 = vunpack.c.h.b16 %v112
    %v209 = vunpack.c.l.b16 %v113
    %v210 = vunpack.c.h.b16 %v113
    %v211 = vunpack.c.l.b16 %v114
    %v212 = vunpack.c.h.b16 %v114
    %v213 = vunpack.c.l.b16 %v115
    %v214 = vunpack.c.h.b16 %v115
    %v215 = vunpack.c.l.b16 %v116
    %v216 = vunpack.c.h.b16 %v116
    %v217 = vunpack.c.l.b16 %v117
    %v218 = vunpack.c.h.b16 %v117
    %v219 = vunpack.c.l.b16 %v118
    %v220 = vunpack.c.h.b16 %v118
    %v221 = vunpack.c.l.b16 %v119
    %v222 = vunpack.c.h.b16 %v119
    %v223 = vunpack.c.l.b16 %v120
    %v224 = vunpack.c.h.b16 %v120
    %v225 = vunpack.c.l.b16 %v121
    %v226 = vunpack.c.h.b16 %v121
    %v227 = vunpack.c.l.b16 %v122
    %v228 = vunpack.c.h.b16 %v122
    %v229 = vpack.c.b16 %v169, %v165
    %v230 = vpack.c.b16 %v170, %v166
    %v231 = vpack.c.b16 %v171, %v167
    %v232 = vpack.c.b16 %v172, %v168
    %v233 = vpack.c.b16 %v177, %v173
    %v234 = vpack.c.b16 %v178, %v174
    %v235 = vpack.c.b16 %v179, %v175
    %v236 = vpack.c.b16 %v180, %v176
    %v237 = vpack.c.b16 %v185, %v181
    %v238 = vpack.c.b16 %v186, %v182
    %v239 = vpack.c.b16 %v187, %v183
    %v240 = vpack.c.b16 %v188, %v184
    %v241 = vpack.c.b16 %v193, %v189
    %v242 = vpack.c.b16 %v194, %v190
    %v243 = vpack.c.b16 %v195, %v191
    %v244 = vpack.c.b16 %v196, %v192
    %v245 = vpack.c.b16 %v201, %v197
    %v246 = vpack.c.b16 %v202, %v198
    %v247 = vpack.c.b16 %v203, %v199
    %v248 = vpack.c.b16 %v204, %v200
    %v249 = vpack.c.b16 %v209, %v205
    %v250 = vpack.c.b16 %v210, %v206
    %v251 = vpack.c.b16 %v211, %v207
    %v252 = vpack.c.b16 %v212, %v208
    %v253 = vpack.c.b16 %v217, %v213
    %v254 = vpack.c.b16 %v218, %v214
    %v255 = vpack.c.b16 %v219, %v215
    %v256 = vpack.c.b16 %v220, %v216
    %v257 = vpack.c.b16 %v225, %v221
    %v258 = vpack.c.b16 %v226, %v222
    %v259 = vpack.c.b16 %v227, %v223
    %v260 = vpack.c.b16 %v228, %v224
    %293 = vmatpush.bf16.msra.mxu0 %v257
    %294 = vmatpush.bf16.msra.mxu0 %v253
    %295 = vmatpush.bf16.msra.mxu0 %v249
    %296 = vmatpush.bf16.msra.mxu0 %v245
    %297 = vmatpush.bf16.msra.mxu0 %v241
    %298 = vmatpush.bf16.msra.mxu0 %v237
    %299 = vmatpush.bf16.msra.mxu0 %v233
    %300 = vmatpush.bf16.msra.mxu0 %v229
    %301 = vmatmul.bf16.gmra.mxu0 %v90
    %v302 = vpop.f32.mrf.mxu0
    %v303 = vadd.f32 %v125, %v302
    %v304 = vpop.f32.mrf.mxu0
    %v305 = vadd.f32 %v125, %v304
    %306 = vdwg.mxu0
    %307 = vmatpush.bf16.msra.mxu0 %v258
    %308 = vmatpush.bf16.msra.mxu0 %v254
    %309 = vmatpush.bf16.msra.mxu0 %v250
    %310 = vmatpush.bf16.msra.mxu0 %v246
    %311 = vmatpush.bf16.msra.mxu0 %v242
    %312 = vmatpush.bf16.msra.mxu0 %v238
    %313 = vmatpush.bf16.msra.mxu0 %v234
    %314 = vmatpush.bf16.msra.mxu0 %v230
    %315 = vmatmul.bf16.gmra.mxu0 %v90
    %v316 = vpop.f32.mrf.mxu0
    %v317 = vadd.f32 %v126, %v316
    %v318 = vpop.f32.mrf.mxu0
    %v319 = vadd.f32 %v126, %v318
    %320 = vdwg.mxu0
    %321 = vmatpush.bf16.msra.mxu0 %v259
    %322 = vmatpush.bf16.msra.mxu0 %v255
    %323 = vmatpush.bf16.msra.mxu0 %v251
    %324 = vmatpush.bf16.msra.mxu0 %v247
    %325 = vmatpush.bf16.msra.mxu0 %v243
    %326 = vmatpush.bf16.msra.mxu0 %v239
    %327 = vmatpush.bf16.msra.mxu0 %v235
    %328 = vmatpush.bf16.msra.mxu0 %v231
    %329 = vmatmul.bf16.gmra.mxu0 %v90
    %v330 = vpop.f32.mrf.mxu0
    %v331 = vadd.f32 %v127, %v330
    %v332 = vpop.f32.mrf.mxu0
    %v333 = vadd.f32 %v127, %v332
    %334 = vdwg.mxu0
    %335 = vmatpush.bf16.msra.mxu0 %v260
    %336 = vmatpush.bf16.msra.mxu0 %v256
    %337 = vmatpush.bf16.msra.mxu0 %v252
    %338 = vmatpush.bf16.msra.mxu0 %v248
    %339 = vmatpush.bf16.msra.mxu0 %v244
    %340 = vmatpush.bf16.msra.mxu0 %v240
    %341 = vmatpush.bf16.msra.mxu0 %v236
    %342 = vmatpush.bf16.msra.mxu0 %v232
    %343 = vmatmul.bf16.gmra.mxu0 %v90
    %v344 = vpop.f32.mrf.mxu0
    %v345 = vadd.f32 %v128, %v344
    %v346 = vpop.f32.mrf.mxu0
    %v347 = vadd.f32 %v128, %v346
    %348 = vdwg.mxu0
    %v349 = vmul.f32 %v303, 0.5
    %v350 = vmul.f32 %v317, 0.5
    %v351 = vmul.f32 %v331, 0.5
    %v352 = vmul.f32 %v345, 0.5
    %v353 = vmul.f32 %v305, 0.5
    %v354 = vmul.f32 %v319, 0.5
    %v355 = vmul.f32 %v333, 0.5
    %v356 = vmul.f32 %v347, 0.5
    %v357 = vmul.f32 %v303, 0.70710677
    %v358 = vmul.f32 %v317, 0.70710677
    %v359 = vmul.f32 %v331, 0.70710677
    %v360 = vmul.f32 %v345, 0.70710677
    %v361 = vmul.f32 %v305, 0.70710677
    %v362 = vmul.f32 %v319, 0.70710677
    %v363 = vmul.f32 %v333, 0.70710677
    %v364 = vmul.f32 %v347, 0.70710677
    %v365 = vand.u32 2147483647, %v357
    %v366 = vand.u32 2147483647, %v358
    %v367 = vand.u32 2147483647, %v359
    %v368 = vand.u32 2147483647, %v360
    %v369 = vand.u32 2147483647, %v361
    %v370 = vand.u32 2147483647, %v362
    %v371 = vand.u32 2147483647, %v363
    %v372 = vand.u32 2147483647, %v364
    %v373 = vmul.f32 %v365, 0.3275911
    %v374 = vmul.f32 %v366, 0.3275911
    %v375 = vmul.f32 %v367, 0.3275911
    %v376 = vmul.f32 %v368, 0.3275911
    %v377 = vmul.f32 %v369, 0.3275911
    %v378 = vmul.f32 %v370, 0.3275911
    %v379 = vmul.f32 %v371, 0.3275911
    %v380 = vmul.f32 %v372, 0.3275911
    %v381 = vadd.f32 %v373, 1.0
    %v382 = vadd.f32 %v374, 1.0
    %v383 = vadd.f32 %v375, 1.0
    %v384 = vadd.f32 %v376, 1.0
    %v385 = vadd.f32 %v377, 1.0
    %v386 = vadd.f32 %v378, 1.0
    %v387 = vadd.f32 %v379, 1.0
    %v388 = vadd.f32 %v380, 1.0
    %v389 = vrcp.pop %v381
    %v390 = vmul.f32 %v381, %v389
    %v391 = vsub.f32 1.0, %v390
    %v392 = vmul.f32 %v389, %v391
    %v393 = vadd.f32 %v389, %v392
    %vm394 = vweird.f32 %v381
    %vm395 = vweird.f32 %v389
    %vm396 = vmor %vm394, %vm395
    %v397 = vsel %vm396, %v389, %v393
    %v398 = vand.u32 2147483647, %v381
    %vm399 = vcmp.eq.f32.partialorder %v398, 8.507059e+37
    %v400 = vand.u32 %v381, 2147483648
    %v401 = vor.u32 1.1754944e-38, %v400
    %v402 = vsel %vm399, %v401, %v397
    %v403 = vmul.f32 1.0, %v402
    %v404 = vrcp.pop %v382
    %v405 = vmul.f32 %v382, %v404
    %v406 = vsub.f32 1.0, %v405
    %v407 = vmul.f32 %v404, %v406
    %v408 = vadd.f32 %v404, %v407
    %vm409 = vweird.f32 %v382
    %vm410 = vweird.f32 %v404
    %vm411 = vmor %vm409, %vm410
    %v412 = vsel %vm411, %v404, %v408
    %v413 = vand.u32 2147483647, %v382
    %vm414 = vcmp.eq.f32.partialorder %v413, 8.507059e+37
    %v415 = vand.u32 %v382, 2147483648
    %v416 = vor.u32 1.1754944e-38, %v415
    %v417 = vsel %vm414, %v416, %v412
    %v418 = vmul.f32 1.0, %v417
    %v419 = vrcp.pop %v383
    %v420 = vmul.f32 %v383, %v419
    %v421 = vsub.f32 1.0, %v420
    %v422 = vmul.f32 %v419, %v421
    %v423 = vadd.f32 %v419, %v422
    %vm424 = vweird.f32 %v383
    %vm425 = vweird.f32 %v419
    %vm426 = vmor %vm424, %vm425
    %v427 = vsel %vm426, %v419, %v423
    %v428 = vand.u32 2147483647, %v383
    %vm429 = vcmp.eq.f32.partialorder %v428, 8.507059e+37
    %v430 = vand.u32 %v383, 2147483648
    %v431 = vor.u32 1.1754944e-38, %v430
    %v432 = vsel %vm429, %v431, %v427
    %v433 = vmul.f32 1.0, %v432
    %v434 = vrcp.pop %v384
    %v435 = vmul.f32 %v384, %v434
    %v436 = vsub.f32 1.0, %v435
    %v437 = vmul.f32 %v434, %v436
    %v438 = vadd.f32 %v434, %v437
    %vm439 = vweird.f32 %v384
    %vm440 = vweird.f32 %v434
    %vm441 = vmor %vm439, %vm440
    %v442 = vsel %vm441, %v434, %v438
    %v443 = vand.u32 2147483647, %v384
    %vm444 = vcmp.eq.f32.partialorder %v443, 8.507059e+37
    %v445 = vand.u32 %v384, 2147483648
    %v446 = vor.u32 1.1754944e-38, %v445
    %v447 = vsel %vm444, %v446, %v442
    %v448 = vmul.f32 1.0, %v447
    %v449 = vrcp.pop %v385
    %v450 = vmul.f32 %v385, %v449
    %v451 = vsub.f32 1.0, %v450
    %v452 = vmul.f32 %v449, %v451
    %v453 = vadd.f32 %v449, %v452
    %vm454 = vweird.f32 %v385
    %vm455 = vweird.f32 %v449
    %vm456 = vmor %vm454, %vm455
    %v457 = vsel %vm456, %v449, %v453
    %v458 = vand.u32 2147483647, %v385
    %vm459 = vcmp.eq.f32.partialorder %v458, 8.507059e+37
    %v460 = vand.u32 %v385, 2147483648
    %v461 = vor.u32 1.1754944e-38, %v460
    %v462 = vsel %vm459, %v461, %v457
    %v463 = vmul.f32 1.0, %v462
    %v464 = vrcp.pop %v386
    %v465 = vmul.f32 %v386, %v464
    %v466 = vsub.f32 1.0, %v465
    %v467 = vmul.f32 %v464, %v466
    %v468 = vadd.f32 %v464, %v467
    %vm469 = vweird.f32 %v386
    %vm470 = vweird.f32 %v464
    %vm471 = vmor %vm469, %vm470
    %v472 = vsel %vm471, %v464, %v468
    %v473 = vand.u32 2147483647, %v386
    %vm474 = vcmp.eq.f32.partialorder %v473, 8.507059e+37
    %v475 = vand.u32 %v386, 2147483648
    %v476 = vor.u32 1.1754944e-38, %v475
    %v477 = vsel %vm474, %v476, %v472
    %v478 = vmul.f32 1.0, %v477
    %v479 = vrcp.pop %v387
    %v480 = vmul.f32 %v387, %v479
    %v481 = vsub.f32 1.0, %v480
    %v482 = vmul.f32 %v479, %v481
    %v483 = vadd.f32 %v479, %v482
    %vm484 = vweird.f32 %v387
    %vm485 = vweird.f32 %v479
    %vm486 = vmor %vm484, %vm485
    %v487 = vsel %vm486, %v479, %v483
    %v488 = vand.u32 2147483647, %v387
    %vm489 = vcmp.eq.f32.partialorder %v488, 8.507059e+37
    %v490 = vand.u32 %v387, 2147483648
    %v491 = vor.u32 1.1754944e-38, %v490
    %v492 = vsel %vm489, %v491, %v487
    %v493 = vmul.f32 1.0, %v492
    %v494 = vrcp.pop %v388
    %v495 = vmul.f32 %v388, %v494
    %v496 = vsub.f32 1.0, %v495
    %v497 = vmul.f32 %v494, %v496
    %v498 = vadd.f32 %v494, %v497
    %vm499 = vweird.f32 %v388
    %vm500 = vweird.f32 %v494
    %vm501 = vmor %vm499, %vm500
    %v502 = vsel %vm501, %v494, %v498
    %v503 = vand.u32 2147483647, %v388
    %vm504 = vcmp.eq.f32.partialorder %v503, 8.507059e+37
    %v505 = vand.u32 %v388, 2147483648
    %v506 = vor.u32 1.1754944e-38, %v505
    %v507 = vsel %vm504, %v506, %v502
    %v508 = vmul.f32 1.0, %v507
    %v509 = vmul.f32 %v403, 1.0614054
    %v510 = vmul.f32 %v418, 1.0614054
    %v511 = vmul.f32 %v433, 1.0614054
    %v512 = vmul.f32 %v448, 1.0614054
    %v513 = vmul.f32 %v463, 1.0614054
    %v514 = vmul.f32 %v478, 1.0614054
    %v515 = vmul.f32 %v493, 1.0614054
    %v516 = vmul.f32 %v508, 1.0614054
    %v517 = vadd.f32 %v509, -1.4531521
    %v518 = vadd.f32 %v510, -1.4531521
    %v519 = vadd.f32 %v511, -1.4531521
    %v520 = vadd.f32 %v512, -1.4531521
    %v521 = vadd.f32 %v513, -1.4531521
    %v522 = vadd.f32 %v514, -1.4531521
    %v523 = vadd.f32 %v515, -1.4531521
    %v524 = vadd.f32 %v516, -1.4531521
    %v525 = vmul.f32 %v517, %v403
    %v526 = vmul.f32 %v518, %v418
    %v527 = vmul.f32 %v519, %v433
    %v528 = vmul.f32 %v520, %v448
    %v529 = vmul.f32 %v521, %v463
    %v530 = vmul.f32 %v522, %v478
    %v531 = vmul.f32 %v523, %v493
    %v532 = vmul.f32 %v524, %v508
    %v533 = vadd.f32 %v525, 1.4214138
    %v534 = vadd.f32 %v526, 1.4214138
    %v535 = vadd.f32 %v527, 1.4214138
    %v536 = vadd.f32 %v528, 1.4214138
    %v537 = vadd.f32 %v529, 1.4214138
    %v538 = vadd.f32 %v530, 1.4214138
    %v539 = vadd.f32 %v531, 1.4214138
    %v540 = vadd.f32 %v532, 1.4214138
    %v541 = vmul.f32 %v533, %v403
    %v542 = vmul.f32 %v534, %v418
    %v543 = vmul.f32 %v535, %v433
    %v544 = vmul.f32 %v536, %v448
    %v545 = vmul.f32 %v537, %v463
    %v546 = vmul.f32 %v538, %v478
    %v547 = vmul.f32 %v539, %v493
    %v548 = vmul.f32 %v540, %v508
    %v549 = vadd.f32 %v541, -0.28449672
    %v550 = vadd.f32 %v542, -0.28449672
    %v551 = vadd.f32 %v543, -0.28449672
    %v552 = vadd.f32 %v544, -0.28449672
    %v553 = vadd.f32 %v545, -0.28449672
    %v554 = vadd.f32 %v546, -0.28449672
    %v555 = vadd.f32 %v547, -0.28449672
    %v556 = vadd.f32 %v548, -0.28449672
    %v557 = vmul.f32 %v549, %v403
    %v558 = vmul.f32 %v550, %v418
    %v559 = vmul.f32 %v551, %v433
    %v560 = vmul.f32 %v552, %v448
    %v561 = vmul.f32 %v553, %v463
    %v562 = vmul.f32 %v554, %v478
    %v563 = vmul.f32 %v555, %v493
    %v564 = vmul.f32 %v556, %v508
    %v565 = vadd.f32 %v557, 0.2548296
    %v566 = vadd.f32 %v558, 0.2548296
    %v567 = vadd.f32 %v559, 0.2548296
    %v568 = vadd.f32 %v560, 0.2548296
    %v569 = vadd.f32 %v561, 0.2548296
    %v570 = vadd.f32 %v562, 0.2548296
    %v571 = vadd.f32 %v563, 0.2548296
    %v572 = vadd.f32 %v564, 0.2548296
    %v573 = vmul.f32 %v565, %v403
    %v574 = vmul.f32 %v566, %v418
    %v575 = vmul.f32 %v567, %v433
    %v576 = vmul.f32 %v568, %v448
    %v577 = vmul.f32 %v569, %v463
    %v578 = vmul.f32 %v570, %v478
    %v579 = vmul.f32 %v571, %v493
    %v580 = vmul.f32 %v572, %v508
    %v581 = vmul.f32 %v365, %v365
    %v582 = vmul.f32 %v366, %v366
    %v583 = vmul.f32 %v367, %v367
    %v584 = vmul.f32 %v368, %v368
    %v585 = vmul.f32 %v369, %v369
    %v586 = vmul.f32 %v370, %v370
    %v587 = vmul.f32 %v371, %v371
    %v588 = vmul.f32 %v372, %v372
    %v589 = vsub.f32 0.0, %v581
    %v590 = vsub.f32 0.0, %v582
    %v591 = vsub.f32 0.0, %v583
    %v592 = vsub.f32 0.0, %v584
    %v593 = vsub.f32 0.0, %v585
    %v594 = vsub.f32 0.0, %v586
    %v595 = vsub.f32 0.0, %v587
    %v596 = vsub.f32 0.0, %v588
    %v597 = vmul.f32 %v589, 1.442695
    %v598 = vpow.pop %v597
    %v599 = vmul.f32 %v590, 1.442695
    %v600 = vpow.pop %v599
    %v601 = vmul.f32 %v591, 1.442695
    %v602 = vpow.pop %v601
    %v603 = vmul.f32 %v592, 1.442695
    %v604 = vpow.pop %v603
    %v605 = vmul.f32 %v593, 1.442695
    %v606 = vpow.pop %v605
    %v607 = vmul.f32 %v594, 1.442695
    %v608 = vpow.pop %v607
    %v609 = vmul.f32 %v595, 1.442695
    %v610 = vpow.pop %v609
    %v611 = vmul.f32 %v596, 1.442695
    %v612 = vpow.pop %v611
    %v613 = vmul.f32 %v573, %v598
    %v614 = vmul.f32 %v574, %v600
    %v615 = vmul.f32 %v575, %v602
    %v616 = vmul.f32 %v576, %v604
    %v617 = vmul.f32 %v577, %v606
    %v618 = vmul.f32 %v578, %v608
    %v619 = vmul.f32 %v579, %v610
    %v620 = vmul.f32 %v580, %v612
    %v621 = vsub.f32 1.0, %v613
    %v622 = vsub.f32 1.0, %v614
    %v623 = vsub.f32 1.0, %v615
    %v624 = vsub.f32 1.0, %v616
    %v625 = vsub.f32 1.0, %v617
    %v626 = vsub.f32 1.0, %v618
    %v627 = vsub.f32 1.0, %v619
    %v628 = vsub.f32 1.0, %v620
    %vm629 = vcmp.lt.f32.partialorder %v357, 0.0
    %vm630 = vcmp.lt.f32.partialorder %v358, 0.0
    %vm631 = vcmp.lt.f32.partialorder %v359, 0.0
    %vm632 = vcmp.lt.f32.partialorder %v360, 0.0
    %vm633 = vcmp.lt.f32.partialorder %v361, 0.0
    %vm634 = vcmp.lt.f32.partialorder %v362, 0.0
    %vm635 = vcmp.lt.f32.partialorder %v363, 0.0
    %vm636 = vcmp.lt.f32.partialorder %v364, 0.0
    %v637 = vsub.f32 0.0, %v621
    %v638 = vsub.f32 0.0, %v622
    %v639 = vsub.f32 0.0, %v623
    %v640 = vsub.f32 0.0, %v624
    %v641 = vsub.f32 0.0, %v625
    %v642 = vsub.f32 0.0, %v626
    %v643 = vsub.f32 0.0, %v627
    %v644 = vsub.f32 0.0, %v628
    %v645 = vsel %vm629, %v637, %v621
    %v646 = vsel %vm630, %v638, %v622
    %v647 = vsel %vm631, %v639, %v623
    %v648 = vsel %vm632, %v640, %v624
    %v649 = vsel %vm633, %v641, %v625
    %v650 = vsel %vm634, %v642, %v626
    %v651 = vsel %vm635, %v643, %v627
    %v652 = vsel %vm636, %v644, %v628
    %v653 = vadd.f32 %v645, 1.0
    %v654 = vadd.f32 %v646, 1.0
    %v655 = vadd.f32 %v647, 1.0
    %v656 = vadd.f32 %v648, 1.0
    %v657 = vadd.f32 %v649, 1.0
    %v658 = vadd.f32 %v650, 1.0
    %v659 = vadd.f32 %v651, 1.0
    %v660 = vadd.f32 %v652, 1.0
    %v661 = vmul.f32 %v349, %v653
    %v662 = vmul.f32 %v350, %v654
    %v663 = vmul.f32 %v351, %v655
    %v664 = vmul.f32 %v352, %v656
    %v665 = vmul.f32 %v353, %v657
    %v666 = vmul.f32 %v354, %v658
    %v667 = vmul.f32 %v355, %v659
    %v668 = vmul.f32 %v356, %v660
    %v669 = vpack.c.bf16 %v665, %v661
    %v670 = vpack.c.bf16 %v666, %v662
    %v671 = vpack.c.bf16 %v667, %v663
    %v672 = vpack.c.bf16 %v668, %v664
    %v673 = vld [vmem:[#allocation8] sm:$0xf]
    %v674 = vld [vmem:[#allocation8 + $0x4] sm:$0xf]
    %v675 = vld [vmem:[#allocation8 + $0x8] sm:$0xf]
    %v676 = vld [vmem:[#allocation8 + $0xc] sm:$0xf]
    %v677 = vld [vmem:[#allocation8 + $0x10] sm:$0xf]
    %v678 = vld [vmem:[#allocation8 + $0x14] sm:$0xf]
    %v679 = vld [vmem:[#allocation8 + $0x18] sm:$0xf]
    %v680 = vld [vmem:[#allocation8 + $0x1c] sm:$0xf]
    %v681 = vld [vmem:[#allocation8 + $0x20] sm:$0xf]
    %v682 = vld [vmem:[#allocation8 + $0x24] sm:$0xf]
    %v683 = vld [vmem:[#allocation8 + $0x28] sm:$0xf]
    %v684 = vld [vmem:[#allocation8 + $0x2c] sm:$0xf]
    %v685 = vld [vmem:[#allocation8 + $0x30] sm:$0xf]
    %v686 = vld [vmem:[#allocation8 + $0x34] sm:$0xf]
    %v687 = vld [vmem:[#allocation8 + $0x38] sm:$0xf]
    %v688 = vld [vmem:[#allocation8 + $0x3c] sm:$0xf]
    %v689 = vld [vmem:[#allocation8 + $0x40] sm:$0xf]
    %v690 = vld [vmem:[#allocation8 + $0x44] sm:$0xf]
    %v691 = vld [vmem:[#allocation8 + $0x48] sm:$0xf]
    %v692 = vld [vmem:[#allocation8 + $0x4c] sm:$0xf]
    %v693 = vld [vmem:[#allocation8 + $0x50] sm:$0xf]
    %v694 = vld [vmem:[#allocation8 + $0x54] sm:$0xf]
    %v695 = vld [vmem:[#allocation8 + $0x58] sm:$0xf]
    %v696 = vld [vmem:[#allocation8 + $0x5c] sm:$0xf]
    %v697 = vld [vmem:[#allocation8 + $0x60] sm:$0xf]
    %v698 = vld [vmem:[#allocation8 + $0x64] sm:$0xf]
    %v699 = vld [vmem:[#allocation8 + $0x68] sm:$0xf]
    %v700 = vld [vmem:[#allocation8 + $0x6c] sm:$0xf]
    %v701 = vld [vmem:[#allocation8 + $0x70] sm:$0xf]
    %v702 = vld [vmem:[#allocation8 + $0x74] sm:$0xf]
    %v703 = vld [vmem:[#allocation8 + $0x78] sm:$0xf]
    %v704 = vld [vmem:[#allocation8 + $0x7c] sm:$0xf]
    %v705 = vld [vmem:[#allocation8 + $0x80] sm:$0xf]
    %v706 = vld [vmem:[#allocation8 + $0x84] sm:$0xf]
    %v707 = vld [vmem:[#allocation8 + $0x88] sm:$0xf]
    %v708 = vld [vmem:[#allocation8 + $0x8c] sm:$0xf]
    %v709 = vld [vmem:[#allocation8 + $0x90] sm:$0xf]
    %v710 = vld [vmem:[#allocation8 + $0x94] sm:$0xf]
    %v711 = vld [vmem:[#allocation8 + $0x98] sm:$0xf]
    %v712 = vld [vmem:[#allocation8 + $0x9c] sm:$0xf]
    %v713 = vld [vmem:[#allocation8 + $0xa0] sm:$0xf]
    %v714 = vld [vmem:[#allocation8 + $0xa4] sm:$0xf]
    %v715 = vld [vmem:[#allocation8 + $0xa8] sm:$0xf]
    %v716 = vld [vmem:[#allocation8 + $0xac] sm:$0xf]
    %v717 = vld [vmem:[#allocation8 + $0xb0] sm:$0xf]
    %v718 = vld [vmem:[#allocation8 + $0xb4] sm:$0xf]
    %v719 = vld [vmem:[#allocation8 + $0xb8] sm:$0xf]
    %v720 = vld [vmem:[#allocation8 + $0xbc] sm:$0xf]
    %v721 = vld [vmem:[#allocation8 + $0xc0] sm:$0xf]
    %v722 = vld [vmem:[#allocation8 + $0xc4] sm:$0xf]
    %v723 = vld [vmem:[#allocation8 + $0xc8] sm:$0xf]
    %v724 = vld [vmem:[#allocation8 + $0xcc] sm:$0xf]
    %v725 = vld [vmem:[#allocation8 + $0xd0] sm:$0xf]
    %v726 = vld [vmem:[#allocation8 + $0xd4] sm:$0xf]
    %v727 = vld [vmem:[#allocation8 + $0xd8] sm:$0xf]
    %v728 = vld [vmem:[#allocation8 + $0xdc] sm:$0xf]
    %v729 = vld [vmem:[#allocation8 + $0xe0] sm:$0xf]
    %v730 = vld [vmem:[#allocation8 + $0xe4] sm:$0xf]
    %v731 = vld [vmem:[#allocation8 + $0xe8] sm:$0xf]
    %v732 = vld [vmem:[#allocation8 + $0xec] sm:$0xf]
    %v733 = vld [vmem:[#allocation8 + $0xf0] sm:$0xf]
    %v734 = vld [vmem:[#allocation8 + $0xf4] sm:$0xf]
    %v735 = vld [vmem:[#allocation8 + $0xf8] sm:$0xf]
    %v736 = vld [vmem:[#allocation8 + $0xfc] sm:$0xf]
    %v737 = vld [vmem:[%s4] sm:$0x1]
    %v739 = vperm.slane %v737, 0
    %v805 = vunpack.c.l.b16 %v673
    %v806 = vunpack.c.l.b16 %v674
    %v807 = vunpack.c.l.b16 %v675
    %v808 = vunpack.c.l.b16 %v676
    %v809 = vunpack.c.l.b16 %v677
    %v810 = vunpack.c.l.b16 %v678
    %v811 = vunpack.c.l.b16 %v679
    %v812 = vunpack.c.l.b16 %v680
    %v813 = vunpack.c.l.b16 %v681
    %v814 = vunpack.c.l.b16 %v682
    %v815 = vunpack.c.l.b16 %v683
    %v816 = vunpack.c.l.b16 %v684
    %v817 = vunpack.c.l.b16 %v685
    %v818 = vunpack.c.l.b16 %v686
    %v819 = vunpack.c.l.b16 %v687
    %v820 = vunpack.c.l.b16 %v688
    %v821 = vunpack.c.l.b16 %v689
    %v822 = vunpack.c.l.b16 %v690
    %v823 = vunpack.c.l.b16 %v691
    %v824 = vunpack.c.l.b16 %v692
    %v825 = vunpack.c.l.b16 %v693
    %v826 = vunpack.c.l.b16 %v694
    %v827 = vunpack.c.l.b16 %v695
    %v828 = vunpack.c.l.b16 %v696
    %v829 = vunpack.c.l.b16 %v697
    %v830 = vunpack.c.l.b16 %v698
    %v831 = vunpack.c.l.b16 %v699
    %v832 = vunpack.c.l.b16 %v700
    %v833 = vunpack.c.l.b16 %v701
    %v834 = vunpack.c.l.b16 %v702
    %v835 = vunpack.c.l.b16 %v703
    %v836 = vunpack.c.l.b16 %v704
    %v837 = vunpack.c.l.b16 %v705
    %v838 = vunpack.c.l.b16 %v706
    %v839 = vunpack.c.l.b16 %v707
    %v840 = vunpack.c.l.b16 %v708
    %v841 = vunpack.c.l.b16 %v709
    %v842 = vunpack.c.l.b16 %v710
    %v843 = vunpack.c.l.b16 %v711
    %v844 = vunpack.c.l.b16 %v712
    %v845 = vunpack.c.l.b16 %v713
    %v846 = vunpack.c.l.b16 %v714
    %v847 = vunpack.c.l.b16 %v715
    %v848 = vunpack.c.l.b16 %v716
    %v849 = vunpack.c.l.b16 %v717
    %v850 = vunpack.c.l.b16 %v718
    %v851 = vunpack.c.l.b16 %v719
    %v852 = vunpack.c.l.b16 %v720
    %v853 = vunpack.c.l.b16 %v721
    %v854 = vunpack.c.l.b16 %v722
    %v855 = vunpack.c.l.b16 %v723
    %v856 = vunpack.c.l.b16 %v724
    %v857 = vunpack.c.l.b16 %v725
    %v858 = vunpack.c.l.b16 %v726
    %v859 = vunpack.c.l.b16 %v727
    %v860 = vunpack.c.l.b16 %v728
    %v861 = vunpack.c.l.b16 %v729
    %v862 = vunpack.c.l.b16 %v730
    %v863 = vunpack.c.l.b16 %v731
    %v864 = vunpack.c.l.b16 %v732
    %v865 = vunpack.c.l.b16 %v733
    %v866 = vunpack.c.l.b16 %v734
    %v867 = vunpack.c.l.b16 %v735
    %v868 = vunpack.c.l.b16 %v736
    %v869 = vpack.c.b16 %v806, %v805
    %v870 = vpack.c.b16 %v808, %v807
    %v871 = vpack.c.b16 %v810, %v809
    %v872 = vpack.c.b16 %v812, %v811
    %v873 = vpack.c.b16 %v814, %v813
    %v874 = vpack.c.b16 %v816, %v815
    %v875 = vpack.c.b16 %v818, %v817
    %v876 = vpack.c.b16 %v820, %v819
    %v877 = vpack.c.b16 %v822, %v821
    %v878 = vpack.c.b16 %v824, %v823
    %v879 = vpack.c.b16 %v826, %v825
    %v880 = vpack.c.b16 %v828, %v827
    %v881 = vpack.c.b16 %v830, %v829
    %v882 = vpack.c.b16 %v832, %v831
    %v883 = vpack.c.b16 %v834, %v833
    %v884 = vpack.c.b16 %v836, %v835
    %v885 = vpack.c.b16 %v838, %v837
    %v886 = vpack.c.b16 %v840, %v839
    %v887 = vpack.c.b16 %v842, %v841
    %v888 = vpack.c.b16 %v844, %v843
    %v889 = vpack.c.b16 %v846, %v845
    %v890 = vpack.c.b16 %v848, %v847
    %v891 = vpack.c.b16 %v850, %v849
    %v892 = vpack.c.b16 %v852, %v851
    %v893 = vpack.c.b16 %v854, %v853
    %v894 = vpack.c.b16 %v856, %v855
    %v895 = vpack.c.b16 %v858, %v857
    %v896 = vpack.c.b16 %v860, %v859
    %v897 = vpack.c.b16 %v862, %v861
    %v898 = vpack.c.b16 %v864, %v863
    %v899 = vpack.c.b16 %v866, %v865
    %v900 = vpack.c.b16 %v868, %v867
    %933 = vmatpush.bf16.msra.mxu0 %v876
    %934 = vmatpush.bf16.msra.mxu0 %v875
    %935 = vmatpush.bf16.msra.mxu0 %v874
    %936 = vmatpush.bf16.msra.mxu0 %v873
    %937 = vmatpush.bf16.msra.mxu0 %v872
    %938 = vmatpush.bf16.msra.mxu0 %v871
    %939 = vmatpush.bf16.msra.mxu0 %v870
    %940 = vmatpush.bf16.msra.mxu0 %v869
    %941 = vmatmul.bf16.gmra.mxu0 %v669
    %v942 = vpop.f32.mrf.mxu0
    %v943 = vadd.f32 %v739, %v942
    %v944 = vpop.f32.mrf.mxu0
    %v945 = vadd.f32 %v739, %v944
    %946 = vdwg.mxu0
    %947 = vmatpush.bf16.msra.mxu0 %v884
    %948 = vmatpush.bf16.msra.mxu0 %v883
    %949 = vmatpush.bf16.msra.mxu0 %v882
    %950 = vmatpush.bf16.msra.mxu0 %v881
    %951 = vmatpush.bf16.msra.mxu0 %v880
    %952 = vmatpush.bf16.msra.mxu0 %v879
    %953 = vmatpush.bf16.msra.mxu0 %v878
    %954 = vmatpush.bf16.msra.mxu0 %v877
    %955 = vmatmul.bf16.gmra.mxu0 %v670
    %v956 = vpop.f32.mrf.mxu0
    %v957 = vadd.f32 %v943, %v956
    %v958 = vpop.f32.mrf.mxu0
    %v959 = vadd.f32 %v945, %v958
    %960 = vdwg.mxu0
    %961 = vmatpush.bf16.msra.mxu0 %v892
    %962 = vmatpush.bf16.msra.mxu0 %v891
    %963 = vmatpush.bf16.msra.mxu0 %v890
    %964 = vmatpush.bf16.msra.mxu0 %v889
    %965 = vmatpush.bf16.msra.mxu0 %v888
    %966 = vmatpush.bf16.msra.mxu0 %v887
    %967 = vmatpush.bf16.msra.mxu0 %v886
    %968 = vmatpush.bf16.msra.mxu0 %v885
    %969 = vmatmul.bf16.gmra.mxu0 %v671
    %v970 = vpop.f32.mrf.mxu0
    %v971 = vadd.f32 %v957, %v970
    %v972 = vpop.f32.mrf.mxu0
    %v973 = vadd.f32 %v959, %v972
    %974 = vdwg.mxu0
    %975 = vmatpush.bf16.msra.mxu0 %v900
    %976 = vmatpush.bf16.msra.mxu0 %v899
    %977 = vmatpush.bf16.msra.mxu0 %v898
    %978 = vmatpush.bf16.msra.mxu0 %v897
    %979 = vmatpush.bf16.msra.mxu0 %v896
    %980 = vmatpush.bf16.msra.mxu0 %v895
    %981 = vmatpush.bf16.msra.mxu0 %v894
    %982 = vmatpush.bf16.msra.mxu0 %v893
    %983 = vmatmul.bf16.gmra.mxu0 %v672
    %v984 = vpop.f32.mrf.mxu0
    %v985 = vadd.f32 %v971, %v984
    %v986 = vpop.f32.mrf.mxu0
    %v987 = vadd.f32 %v973, %v986
    %988 = vdwg.mxu0
    %v989 = vadd.f32 %v985, %v88
    %v990 = vadd.f32 %v987, %v89
    %991 = vadd.xlane.f32.xlu0 %v989
    %v992 = vpop.xlane.xlu0 %991
    %993 = vadd.xlane.f32.xlu0 %v990
    %v994 = vpop.xlane.xlu0 %993
    %v995 = vrcp.pop 128.0
    %v996 = vmul.f32 128.0, %v995
    %v997 = vsub.f32 1.0, %v996
    %v998 = vmul.f32 %v995, %v997
    %v999 = vadd.f32 %v995, %v998
    %vm1000 = vweird.f32 %v995
    %v1001 = vsel %vm1000, %v995, %v999
    %v1002 = vmul.f32 %v992, %v1001
    %v1003 = vmul.f32 %v994, %v1001
    %v1004 = vsub.f32 %v989, %v1002
    %v1005 = vsub.f32 %v990, %v1003
    %v1006 = vmul.f32 %v1004, %v1004
    %v1007 = vmul.f32 %v1005, %v1005
    %1008 = vadd.xlane.f32.xlu0 %v1006
    %v1009 = vpop.xlane.xlu0 %1008
    %1010 = vadd.xlane.f32.xlu0 %v1007
    %v1011 = vpop.xlane.xlu0 %1010
    %v1012 = vmul.f32 %v1009, %v1001
    %v1013 = vmul.f32 %v1011, %v1001
    %v1014 = vadd.f32 %v1012, 1e-12
    %v1015 = vadd.f32 %v1013, 1e-12
    %v1016 = vrsqrt.pop %v1014
    %v1017 = vmul.f32 %v1016, %v1014
    %v1018 = vmul.f32 %v1017, %v1016
    %v1019 = vmul.f32 0.5, %v1018
    %v1020 = vsub.f32 1.5, %v1019
    %v1021 = vmul.f32 %v1016, %v1020
    %vm1022 = vweird.f32 %v1014
    %vm1023 = vweird.f32 %v1016
    %vm1024 = vmor %vm1022, %vm1023
    %v1025 = vsel %vm1024, %v1016, %v1021
    %v1026 = vrsqrt.pop %v1015
    %v1027 = vmul.f32 %v1026, %v1015
    %v1028 = vmul.f32 %v1027, %v1026
    %v1029 = vmul.f32 0.5, %v1028
    %v1030 = vsub.f32 1.5, %v1029
    %v1031 = vmul.f32 %v1026, %v1030
    %vm1032 = vweird.f32 %v1015
    %vm1033 = vweird.f32 %v1026
    %vm1034 = vmor %vm1032, %vm1033
    %v1035 = vsel %vm1034, %v1026, %v1031
    %v1036 = vmul.f32 %v1004, %v1025
    %v1037 = vmul.f32 %v1005, %v1035
    %v1038 = vld [vmem:[%s5] sm:$0x1]
    %v1040 = vperm.slane %v1038, 0
    %v1042 = vmul.f32 %v1036, %v1040
    %v1043 = vmul.f32 %v1037, %v1040
    %v1044 = vld [vmem:[%s6] sm:$0x1]
    %v1046 = vperm.slane %v1044, 0
    %v1048 = vadd.f32 %v1042, %v1046
    %v1049 = vadd.f32 %v1043, %v1046
    %1050 = vst [vmem:[#allocation10] sm:$0xff] %v1048
    %1051 = vst [vmem:[#allocation10 + $0x8] sm:$0xff] %v1049
    // Predicated region
    $region46: #{tpu_custom_call.1} parent=1 // pred_check
      _
    $region47: #{tpu_custom_call.1} parent=1 // pred_check_branch
      %1053 = sbr.rel (0) target = $region49
    $region48: #{tpu_custom_call.1} parent=1 // pred_region
      %1055 = vsyncadd [#allocation4], 0
      %s1056 = sshll.u32 [#allocation10], 4
      %s1057 = int_to_ptr.vmem [resolvable:$true] %s1056
      %s1058 = sshll.u32 %s7, 4
      %s1059 = int_to_ptr.hbm [resolvable:$true] %s1058
      %1064 = dma.vmem_to_hbm [thread:$0]  %s1057, 256, %s1059, [#allocation4], 128, 128, 8
    $region49: #{tpu_custom_call.1} parent=1 // pred_fallthru
      _
    // Predicated region
    $region50: #{tpu_custom_call.1} parent=1 // pred_check
      _
    $region51: #{tpu_custom_call.1} parent=1 // pred_check_branch
      %1066 = sbr.rel (0) target = $region53
    $region52: #{tpu_custom_call.1} parent=1 // pred_region
      %1068 = dma.done [#allocation4], 256
    $region53: #{tpu_custom_call.1} parent=1 // pred_fallthru
      _
    %1069 = vsyncpa [#allocation3], 1
    %1070 = vsyncpa [#allocation6], 1
    %1071 = vsyncpa [#allocation9], 1
    %1072 = vsyncpa [#allocation4], 1

</llo_original>
